<compile_context>
chip_gen: v7x
topology: tpu7x:2x2x1
jax: 0.10.0
libtpu: 0.0.40
codegen_flags: <defaults>
</compile_context>

<pallas_src>
import functools

import jax
import jax.numpy as jnp
from jax.experimental import pallas as pl
from jax.experimental.pallas import tpu as pltpu

LANE = 128
SUBLANE = 8


def _round_up(n, m):
    return ((n + m - 1) // m) * m


def mlp_kernel(x_ref, w1_ref, b1_ref, w2_ref, b2_ref, o_ref):
    # In-kernel cast of the streamed operand (VPU has slack; saves an HBM pass).
    x = x_ref[...].astype(jnp.bfloat16)
    # linear1 on the MXU with f32 accumulation.
    lin = jnp.dot(x, w1_ref[...], preferred_element_type=jnp.float32)
    lin = lin + b1_ref[...]                      # (1, H) bias broadcast over batch
    # sigmoid on the f32 accumulator (EUP exp; avoids bf16 VPU/EUP issues on v5e).
    hidden = jax.nn.sigmoid(lin)
    # Downcast only for the second MXU matmul.
    pred = jnp.dot(hidden.astype(jnp.bfloat16), w2_ref[...],
                   preferred_element_type=jnp.float32)
    pred = pred + b2_ref[...]
    o_ref[...] = pred.astype(o_ref.dtype)


def _vmem_estimate_bytes(tile_m, d_in, h, d_out):
    """Rough upper bound on VMEM use for one grid configuration."""
    def lane(n):
        return _round_up(max(n, 1), LANE)

    def sub(n):
        return _round_up(max(n, 1), SUBLANE)

    x_tile = 2 * sub(tile_m) * lane(d_in) * 4      # f32 input tile, double-buffered
    o_tile = 2 * sub(tile_m) * lane(d_out) * 4     # f32 output tile, double-buffered
    w1 = sub(d_in) * lane(h) * 2                   # bf16, single-buffered (Buffered(1))
    w2 = sub(h) * lane(d_out) * 2
    b1 = SUBLANE * lane(h) * 4
    b2 = SUBLANE * lane(d_out) * 4
    tmp = 2 * sub(tile_m) * lane(h) * 4            # in-kernel f32 temporaries (rough)
    return x_tile + o_tile + w1 + w2 + b1 + b2 + tmp


@functools.partial(jax.jit, static_argnames=("tm",))
def mlp_forward(x, w1, b1, w2, b2, *, tm=512):
    """y = sigmoid(x @ w1 + b1) @ w2 + b2 as a Pallas kernel (true-width I/O)."""
    B, D_in = x.shape
    H = w1.shape[1]
    D_out = w2.shape[1]

    # ---- batch tile selection ------------------------------------------------
    # * multiple of 8 sublanes (hard requirement for the block's second-to-last
    #   dim when it is not the full array dim)  -- fixes arbitrary-tm concern.
    # * at most `tm` rows (big tiles amortize the ~0.35us per-step overhead).
    # * >= 2 grid steps whenever B allows it, so the "parallel" batch axis can
    #   shard across both TensorCores on v7x.
    tile_m = _round_up(max(tm, SUBLANE), SUBLANE)
    if B > SUBLANE:
        tile_m = min(tile_m, _round_up(-(-B // 2), SUBLANE))
    else:
        tile_m = min(tile_m, _round_up(B, SUBLANE))

    # Keep everything comfortably under v7x's 64 MiB physical VMEM (and raise
    # the scoped limit explicitly so v5e's 16 MiB default doesn't trip).
    VMEM_LIMIT = 48 * 1024 * 1024
    while tile_m > SUBLANE and _vmem_estimate_bytes(tile_m, D_in, H, D_out) > VMEM_LIMIT // 2:
        tile_m = max(SUBLANE, _round_up(tile_m // 2, SUBLANE))
    # TODO(synk): for very wide layers where w1/w2 alone exceed the VMEM budget
    # (e.g. D_in=H=4096 on v7x), add a K/H-tiled accumulator grid axis instead
    # of full weight residency.

    num_tiles = -(-B // tile_m)   # ragged last block handled by Pallas (rows independent)

    # Weights / biases are tiny and VMEM-resident: one cheap cast to bf16 here.
    w1b = w1.astype(jnp.bfloat16)
    w2b = w2.astype(jnp.bfloat16)
    b1f = b1.astype(jnp.float32)
    b2f = b2.astype(jnp.float32)

    return pl.pallas_call(
        mlp_kernel,
        out_shape=jax.ShapeDtypeStruct((B, D_out), jnp.float32),
        grid=(num_tiles,),
        in_specs=[
            # x tiles stream along the batch axis (auto software-pipelined).
            # Last dim equals the full array dim -> legal without 128-padding.
            pl.BlockSpec((tile_m, D_in), lambda i: (i, 0)),
            # Resident weights / biases: constant index_map (loaded once) and
            # single-buffered to halve their VMEM footprint.
            pl.BlockSpec((D_in, H), lambda i: (0, 0), pipeline_mode=pl.Buffered(1)),
            pl.BlockSpec((1, H), lambda i: (0, 0), pipeline_mode=pl.Buffered(1)),
            pl.BlockSpec((H, D_out), lambda i: (0, 0), pipeline_mode=pl.Buffered(1)),
            pl.BlockSpec((1, D_out), lambda i: (0, 0), pipeline_mode=pl.Buffered(1)),
        ],
        # True-width output (no 16x lane padding, no trailing slice/copy).
        out_specs=pl.BlockSpec((tile_m, D_out), lambda i: (i, 0)),
        compiler_params=pltpu.CompilerParams(
            # Batch axis is independent -> v7x may shard it over both TCs.
            dimension_semantics=("parallel",),
            vmem_limit_bytes=VMEM_LIMIT,
        ),
    )(x, w1b, b1f, w2b, b2f)


def init_linear_params(key, fan_in, fan_out):
    # Deterministic init mimicking nn.Linear default: U(-1/sqrt(fan_in), 1/sqrt(fan_in)).
    kw, kb = jax.random.split(key)
    bound = 1.0 / jnp.sqrt(jnp.float32(fan_in))
    w = jax.random.uniform(kw, (fan_in, fan_out), jnp.float32, -bound, bound)
    b = jax.random.uniform(kb, (1, fan_out), jnp.float32, -bound, bound)
    return w, b


if __name__ == "__main__":
    num_inputs, hidden_size, num_outputs = 32, 32, 8
    batch = 8

    key = jax.random.PRNGKey(0)
    kx, k1, k2 = jax.random.split(key, 3)

    x = jax.random.normal(kx, (batch, num_inputs), jnp.float32)
    w1, b1 = init_linear_params(k1, num_inputs, hidden_size)
    w2, b2 = init_linear_params(k2, num_inputs, num_outputs) if False else \
        init_linear_params(k2, hidden_size, num_outputs)

    out = mlp_forward(x, w1, b1, w2, b2)
    out = jax.block_until_ready(out)

    # Reference in plain JAX, mimicking the kernel's bf16 storage / f32 accumulation.
    xb = x.astype(jnp.bfloat16).astype(jnp.float32)
    w1b = w1.astype(jnp.bfloat16).astype(jnp.float32)
    w2b = w2.astype(jnp.bfloat16).astype(jnp.float32)
    hidden = jax.nn.sigmoid(xb @ w1b + b1)
    hidden = hidden.astype(jnp.bfloat16).astype(jnp.float32)
    ref = hidden @ w2b + b2

    assert out.shape == (batch, num_outputs)
    assert jnp.allclose(out, ref, atol=2e-3, rtol=2e-3), (
        float(jnp.max(jnp.abs(out - ref))))

    print("KERNEL_OK")
</pallas_src>

<mosaic_0001>
module attributes {stable_mosaic.version = 11 : i64} {
  func.func @mlp_kernel(%arg0: i32, %arg1: memref<8x32xf32, #tpu.memory_space<vmem>>, %arg2: memref<32x32xbf16, #tpu.memory_space<vmem>>, %arg3: memref<1x32xf32, #tpu.memory_space<vmem>>, %arg4: memref<32x8xbf16, #tpu.memory_space<vmem>>, %arg5: memref<1x8xf32, #tpu.memory_space<vmem>>, %arg6: memref<8x8xf32, #tpu.memory_space<vmem>>) attributes {dimension_semantics = [#tpu.dimension_semantics<parallel>], iteration_bounds = array<i64: 1>, scalar_prefetch = 0 : i64, scratch_operands = 0 : i64, tpu.core_type = #tpu.core_type<tc>, window_params = [{transform_indices = @transform_0, window_bounds = array<i64: 8, 32>}, {pipeline_mode = #tpu.pipeline_mode<synchronous>, transform_indices = @transform_1, window_bounds = array<i64: 32, 32>}, {pipeline_mode = #tpu.pipeline_mode<synchronous>, transform_indices = @transform_2, window_bounds = array<i64: 1, 32>}, {pipeline_mode = #tpu.pipeline_mode<synchronous>, transform_indices = @transform_3, window_bounds = array<i64: 32, 8>}, {pipeline_mode = #tpu.pipeline_mode<synchronous>, transform_indices = @transform_4, window_bounds = array<i64: 1, 8>}, {transform_indices = @transform_5, window_bounds = array<i64: 8, 8>}]} {
    %c0 = arith.constant 0 : index
    %c0_0 = arith.constant 0 : index
    %0 = vector.load %arg1[%c0, %c0_0] : memref<8x32xf32, #tpu.memory_space<vmem>>, vector<8x32xf32>
    %1 = arith.truncf %0 : vector<8x32xf32> to vector<8x32xbf16>
    %c0_1 = arith.constant 0 : index
    %c0_2 = arith.constant 0 : index
    %2 = vector.load %arg2[%c0_1, %c0_2] : memref<32x32xbf16, #tpu.memory_space<vmem>>, vector<32x32xbf16>
    %cst = arith.constant dense<0.000000e+00> : vector<8x32xf32>
    %3 = tpu.matmul %1, %2, %cst {dimension_numbers = #tpu.dot_dimension_numbers<[1], [0], [0], [1], [0, 0, 1, 1], [], []>} : vector<8x32xbf16>, vector<32x32xbf16>, vector<8x32xf32> -> vector<8x32xf32>
    %c0_3 = arith.constant 0 : index
    %c0_4 = arith.constant 0 : index
    %4 = vector.load %arg3[%c0_3, %c0_4] : memref<1x32xf32, #tpu.memory_space<vmem>>, vector<1x32xf32>
    %5 = vector.broadcast %4 : vector<1x32xf32> to vector<8x32xf32>
    %6 = arith.addf %3, %5 : vector<8x32xf32>
    %7 = arith.negf %6 : vector<8x32xf32>
    %8 = math.exp %7 : vector<8x32xf32>
    %cst_5 = arith.constant 1.000000e+00 : f32
    %9 = vector.broadcast %cst_5 : f32 to vector<8x32xf32>
    %10 = arith.addf %9, %8 : vector<8x32xf32>
    %11 = arith.divf %9, %10 : vector<8x32xf32>
    %12 = arith.truncf %11 : vector<8x32xf32> to vector<8x32xbf16>
    %c0_6 = arith.constant 0 : index
    %c0_7 = arith.constant 0 : index
    %13 = vector.load %arg4[%c0_6, %c0_7] : memref<32x8xbf16, #tpu.memory_space<vmem>>, vector<32x8xbf16>
    %cst_8 = arith.constant dense<0.000000e+00> : vector<8x8xf32>
    %14 = tpu.matmul %12, %13, %cst_8 {dimension_numbers = #tpu.dot_dimension_numbers<[1], [0], [0], [1], [0, 0, 1, 1], [], []>} : vector<8x32xbf16>, vector<32x8xbf16>, vector<8x8xf32> -> vector<8x8xf32>
    %c0_9 = arith.constant 0 : index
    %c0_10 = arith.constant 0 : index
    %15 = vector.load %arg5[%c0_9, %c0_10] : memref<1x8xf32, #tpu.memory_space<vmem>>, vector<1x8xf32>
    %16 = vector.broadcast %15 : vector<1x8xf32> to vector<8x8xf32>
    %17 = arith.addf %14, %16 : vector<8x8xf32>
    %c0_11 = arith.constant 0 : index
    %c0_12 = arith.constant 0 : index
    %18 = vector.load %arg6[%c0_11, %c0_12] : memref<8x8xf32, #tpu.memory_space<vmem>>, vector<8x8xf32>
    tpu.vector_store %arg6[%c0_11, %c0_12], %17 {strides = array<i32>} : memref<8x8xf32, #tpu.memory_space<vmem>>, vector<8x8xf32>,
    return
  }
  func.func @transform_0(%arg0: i32) -> (i32, i32) {
    %c0_i32 = arith.constant 0 : i32
    %c0_i32_0 = arith.constant 0 : i32
    return %arg0, %c0_i32 : i32, i32
  }
  func.func @transform_1(%arg0: i32) -> (i32, i32) {
    %c0_i32 = arith.constant 0 : i32
    %c0_i32_0 = arith.constant 0 : i32
    %c0_i32_1 = arith.constant 0 : i32
    return %c0_i32, %c0_i32_0 : i32, i32
  }
  func.func @transform_2(%arg0: i32) -> (i32, i32) {
    %c0_i32 = arith.constant 0 : i32
    %c0_i32_0 = arith.constant 0 : i32
    %c0_i32_1 = arith.constant 0 : i32
    return %c0_i32, %c0_i32_0 : i32, i32
  }
  func.func @transform_3(%arg0: i32) -> (i32, i32) {
    %c0_i32 = arith.constant 0 : i32
    %c0_i32_0 = arith.constant 0 : i32
    %c0_i32_1 = arith.constant 0 : i32
    return %c0_i32, %c0_i32_0 : i32, i32
  }
  func.func @transform_4(%arg0: i32) -> (i32, i32) {
    %c0_i32 = arith.constant 0 : i32
    %c0_i32_0 = arith.constant 0 : i32
    %c0_i32_1 = arith.constant 0 : i32
    return %c0_i32, %c0_i32_0 : i32, i32
  }
  func.func @transform_5(%arg0: i32) -> (i32, i32) {
    %c0_i32 = arith.constant 0 : i32
    %c0_i32_0 = arith.constant 0 : i32
    return %arg0, %c0_i32 : i32, i32
  }
}

</mosaic_0001>

<llo_original>
// kernel: mlp_forward.1
$region0: #{mlp_forward.1}
  #allocation0 [shape = 'u32[]', space=smem, size = 0x4, offset = 0x4, fixed_abs, tag = 'smem constant byte address 0x4 - core index']
  #allocation1 [shape = 'u32[144,128]{1,0:T(1,128)}', space=vmem, size = 0x12000, scoped, tag = 'internal scratch']
  %s0 = inlined_call_operand.vmem [shape: f32[8,32], index: 0, kind: input, shape index: {}]
  %s1 = inlined_call_operand.vmem [shape: bf16[32,32], index: 1, kind: input, shape index: {}]
  %s2 = inlined_call_operand.vmem [shape: f32[1,32], index: 2, kind: input, shape index: {}]
  %s3 = inlined_call_operand.vmem [shape: bf16[32,8], index: 3, kind: input, shape index: {}]
  %s4 = inlined_call_operand.vmem [shape: f32[1,8], index: 4, kind: input, shape index: {}]
  %s5 = inlined_call_operand.hbm [shape: f32[8,8], index: 5, kind: output, shape index: {}]
  %s6 = sld [smem:[#allocation0]]
  $region30: #{mlp_forward.1} parent=0
    _
  %s8 = ssub.s32 1, %s6
  %s9 = scalar_select 0, %s8, %s6
  $region1: #{mlp_forward.1} parent=0
    #allocation2 [shape = 'u8[4096]{0}', space=vmem, size = 0x1000, scoped, tag = 'output window, operand 0, single buffered']
    #allocation3 [shape = 's32[1]{0}', space=sflag, size = 0x4, scoped, tag = 'scoped memory for mlp_forward.1']
    %10 = vsyncpa [#allocation3], 0
    // Predicated region
    $region2: #{mlp_forward.1} parent=1 // pred_check
      _
    $region3: #{mlp_forward.1} parent=1 // pred_check_branch
      %12 = sbr.rel (0) target = $region5
    $region4: #{mlp_forward.1} parent=1 // pred_region
      _
    $region5: #{mlp_forward.1} parent=1 // pred_fallthru
      _
    // Predicated region
    $region6: #{mlp_forward.1} parent=1 // pred_check
      _
    $region7: #{mlp_forward.1} parent=1 // pred_check_branch
      %14 = sbr.rel (0) target = $region9
    $region8: #{mlp_forward.1} parent=1 // pred_region
      _
    $region9: #{mlp_forward.1} parent=1 // pred_fallthru
      _
    // Predicated region
    $region10: #{mlp_forward.1} parent=1 // pred_check
      _
    $region11: #{mlp_forward.1} parent=1 // pred_check_branch
      %16 = sbr.rel (0) target = $region13
    $region12: #{mlp_forward.1} parent=1 // pred_region
      _
    $region13: #{mlp_forward.1} parent=1 // pred_fallthru
      _
    // Predicated region
    $region14: #{mlp_forward.1} parent=1 // pred_check
      _
    $region15: #{mlp_forward.1} parent=1 // pred_check_branch
      %18 = sbr.rel (0) target = $region17
    $region16: #{mlp_forward.1} parent=1 // pred_region
      _
    $region17: #{mlp_forward.1} parent=1 // pred_fallthru
      _
    // Predicated region
    $region18: #{mlp_forward.1} parent=1 // pred_check
      _
    $region19: #{mlp_forward.1} parent=1 // pred_check_branch
      %20 = sbr.rel (0) target = $region21
    $region20: #{mlp_forward.1} parent=1 // pred_region
      _
    $region21: #{mlp_forward.1} parent=1 // pred_fallthru
      _
    %v22 = vld [vmem:[%s0] sm:$0xff]
    %v23 = vpack.c.bf16 %v22, %v22
    %v24 = vld [vmem:[%s1] sm:$0xf]
    %v25 = vld [vmem:[%s1 + $0x4] sm:$0xf]
    %v26 = vld [vmem:[%s1 + $0x8] sm:$0xf]
    %v27 = vld [vmem:[%s1 + $0xc] sm:$0xf]
    %v28 = vld [vmem:[%s2] sm:$0x1]
    %v30 = vlaneseq
    %v31 = vshrl.u32 %v30, 7
    %v32 = vsub.s32 0, %v31
    %v33 = vrot.slane %v28, %v32
    %v39 = vunpack.c.l.b16 %v24
    %v40 = vunpack.c.l.b16 %v25
    %v41 = vunpack.c.l.b16 %v26
    %v42 = vunpack.c.l.b16 %v27
    %v43 = vpack.c.b16 %v40, %v39
    %v44 = vpack.c.b16 %v42, %v41
    %vm47 = vcmask 261120
    %v49 = vsel %vm47, %v23, 0
    %51 = vmatprep.subr.bf16.mxu0 0
    %52 = vmatpush1.bf16.msra.mxu0 %v43
    %53 = vmatprep.subr.bf16.mxu0 0
    %54 = vmatpush1.bf16.msra.mxu0 %v44
    %55 = vmatprep.subr.bf16.mxu0 0
    %56 = vmatpush1.bf16.msra.mxu0 0
    %57 = vmatprep.subr.bf16.mxu0 0
    %58 = vmatpush1.bf16.msra.mxu0 0
    %59 = vmatprep.subr.bf16.mxu0 0
    %60 = vmatpush1.bf16.msra.mxu0 0
    %61 = vmatprep.subr.bf16.mxu0 0
    %62 = vmatpush1.bf16.msra.mxu0 0
    %63 = vmatprep.subr.bf16.mxu0 0
    %64 = vmatpush1.bf16.msra.mxu0 0
    %65 = vmatprep.subr.bf16.mxu0 0
    %66 = vmatpush1.bf16.msra.mxu0 0
    %67 = vmatprep.subr.bf16.mxu0 0
    %68 = vmatpush1.bf16.msra.mxu0 0
    %69 = vmatprep.subr.bf16.mxu0 0
    %70 = vmatpush1.bf16.msra.mxu0 0
    %71 = vmatprep.subr.bf16.mxu0 0
    %72 = vmatpush1.bf16.msra.mxu0 0
    %73 = vmatprep.subr.bf16.mxu0 0
    %74 = vmatpush1.bf16.msra.mxu0 0
    %75 = vmatprep.subr.bf16.mxu0 0
    %76 = vmatpush1.bf16.msra.mxu0 0
    %77 = vmatprep.subr.bf16.mxu0 0
    %78 = vmatpush1.bf16.msra.mxu0 0
    %79 = vmatprep.subr.bf16.mxu0 0
    %80 = vmatpush1.bf16.msra.mxu0 0
    %81 = vmatprep.subr.bf16.mxu0 0
    %82 = vmatpush1.bf16.msra.mxu0 0
    %83 = vmatprep.mubr.bf16.mxu0 0
    %84 = vmatmul.mubr.bf16.gmra.mrb[0].mxu0 %v49
    %v85 = vpop.f32.mrb[0].mxu0
    %v86 = vadd.f32 %v33, %v85
    %v87 = vpop.f32.mrb[0].mxu0
    %v88 = vpop.f32.mrb[0].mxu0
    %v89 = vpop.f32.mrb[0].mxu0
    %90 = vdwg.mxu0
    %v91 = vxor.u32 %v86, 2147483648
    %v92 = vmul.f32 %v91, 1.442695
    %v93 = vpow.pop %v92
    %v94 = vadd.f32 %v93, 1.0
    %v95 = vrcp.pop %v94
    %v96 = vmul.f32 1.0, %v95
    %v97 = vpack.c.bf16 %v96, %v96
    %v98 = vld [vmem:[%s3] sm:$0xf]
    %v99 = vld [vmem:[%s3 + $0x4] sm:$0xf]
    %v100 = vld [vmem:[%s3 + $0x8] sm:$0xf]
    %v101 = vld [vmem:[%s3 + $0xc] sm:$0xf]
    %v102 = vld [vmem:[%s4] sm:$0x1]
    %v104 = vlaneseq
    %v105 = vshrl.u32 %v104, 7
    %v106 = vsub.s32 0, %v105
    %v107 = vrot.slane %v102, %v106
    %v113 = vunpack.c.l.b16 %v98
    %v114 = vunpack.c.l.b16 %v99
    %v115 = vunpack.c.l.b16 %v100
    %v116 = vunpack.c.l.b16 %v101
    %v117 = vpack.c.b16 %v114, %v113
    %v118 = vpack.c.b16 %v116, %v115
    %v122 = vsel %vm47, %v97, 0
    %124 = vmatprep.subr.bf16.mxu0 0
    %125 = vmatpush1.bf16.msra.mxu0 %v117
    %126 = vmatprep.subr.bf16.mxu0 0
    %127 = vmatpush1.bf16.msra.mxu0 %v118
    %128 = vmatprep.subr.bf16.mxu0 0
    %129 = vmatpush1.bf16.msra.mxu0 0
    %130 = vmatprep.subr.bf16.mxu0 0
    %131 = vmatpush1.bf16.msra.mxu0 0
    %132 = vmatprep.subr.bf16.mxu0 0
    %133 = vmatpush1.bf16.msra.mxu0 0
    %134 = vmatprep.subr.bf16.mxu0 0
    %135 = vmatpush1.bf16.msra.mxu0 0
    %136 = vmatprep.subr.bf16.mxu0 0
    %137 = vmatpush1.bf16.msra.mxu0 0
    %138 = vmatprep.subr.bf16.mxu0 0
    %139 = vmatpush1.bf16.msra.mxu0 0
    %140 = vmatprep.subr.bf16.mxu0 0
    %141 = vmatpush1.bf16.msra.mxu0 0
    %142 = vmatprep.subr.bf16.mxu0 0
    %143 = vmatpush1.bf16.msra.mxu0 0
    %144 = vmatprep.subr.bf16.mxu0 0
    %145 = vmatpush1.bf16.msra.mxu0 0
    %146 = vmatprep.subr.bf16.mxu0 0
    %147 = vmatpush1.bf16.msra.mxu0 0
    %148 = vmatprep.subr.bf16.mxu0 0
    %149 = vmatpush1.bf16.msra.mxu0 0
    %150 = vmatprep.subr.bf16.mxu0 0
    %151 = vmatpush1.bf16.msra.mxu0 0
    %152 = vmatprep.subr.bf16.mxu0 0
    %153 = vmatpush1.bf16.msra.mxu0 0
    %154 = vmatprep.subr.bf16.mxu0 0
    %155 = vmatpush1.bf16.msra.mxu0 0
    %156 = vmatprep.mubr.bf16.mxu0 0
    %157 = vmatmul.mubr.bf16.gmra.mrb[0].mxu0 %v122
    %v158 = vpop.f32.mrb[0].mxu0
    %v159 = vadd.f32 %v107, %v158
    %v160 = vpop.f32.mrb[0].mxu0
    %v161 = vpop.f32.mrb[0].mxu0
    %v162 = vpop.f32.mrb[0].mxu0
    %163 = vdwg.mxu0
    %vm164 = vcmask 64512
    %165 = vst.msk [vmem:[#allocation2] sm:$0xff] %vm164, %v159
    // Predicated region
    $region22: #{mlp_forward.1} parent=1 // pred_check
      _
    $region23: #{mlp_forward.1} parent=1 // pred_check_branch
      %167 = sbr.rel (0) target = $region25
    $region24: #{mlp_forward.1} parent=1 // pred_region
      %s169 = ssub.s32 128, 128
      %170 = vsyncadd [#allocation3], %s169
      %s172 = sshll.u32 [#allocation2], 4
      %s173 = int_to_ptr.vmem [resolvable:$true] %s172
      %175 = dma.vmem_to_hbm [thread:$0]  %s173, 128, %s5, [#allocation3]
    $region25: #{mlp_forward.1} parent=1 // pred_fallthru
      _
    // Predicated region
    $region26: #{mlp_forward.1} parent=1 // pred_check
      _
    $region27: #{mlp_forward.1} parent=1 // pred_check_branch
      %177 = sbr.rel (0) target = $region29
    $region28: #{mlp_forward.1} parent=1 // pred_region
      %178 = dma.done [#allocation3], 128
    $region29: #{mlp_forward.1} parent=1 // pred_fallthru
      _
    %179 = vsyncpa [#allocation3], 1

</llo_original>
